<compile_context>
chip_gen: v7x
topology: tpu7x:2x2x1
jax: 0.10.0
libtpu: 0.0.40
codegen_flags: <defaults>
</compile_context>

<pallas_src>
import functools

import jax
import jax.numpy as jnp
from jax.experimental import pallas as pl
from jax.experimental.pallas import tpu as pltpu


def _round_up(x, m):
    return (x + m - 1) // m * m


# ===================== Fused LayerNorm + Linear kernel =======================
def _prenorm_linear_kernel(x_ref, g_ref, b_ref, w_ref, bias_ref, o_ref,
                           mean_ref, rstd_ref, acc_ref,
                           *, eps, inv_d, tile_k, n_k):
    k = pl.program_id(2)

    # ---- LayerNorm statistics over the full feature dim (single pass) -------
    # Recomputed at k == 0 for every (row-tile, out-tile) pair; the full-D x
    # block is resident in VMEM across j/k (its block index only depends on i),
    # so this is just two XLU reduces and no extra DMA.  This stays correct
    # when the j axis is megacore-sharded (scratch is per-core).
    @pl.when(k == 0)
    def _():
        x = x_ref[...].astype(jnp.float32)
        s = jnp.sum(x, axis=-1, keepdims=True)
        sq = jnp.sum(x * x, axis=-1, keepdims=True)
        mean = s * inv_d
        var = sq * inv_d - mean * mean          # biased variance (PyTorch LN)
        mean_ref[...] = mean
        rstd_ref[...] = jax.lax.rsqrt(var + eps)
        acc_ref[...] = jnp.zeros_like(acc_ref)

    # ---- normalize the current K slice and feed the MXU ---------------------
    if n_k == 1:
        xk = x_ref[...].astype(jnp.float32)
    else:
        off = pl.multiple_of(k * tile_k, tile_k)    # tile_k is a multiple of 128
        xk = x_ref[:, pl.ds(off, tile_k)].astype(jnp.float32)
    xn = (xk - mean_ref[...]) * rstd_ref[...]
    xn = xn * g_ref[...].astype(jnp.float32) + b_ref[...].astype(jnp.float32)
    acc_ref[...] += jnp.dot(xn.astype(w_ref.dtype), w_ref[...],
                            preferred_element_type=jnp.float32)

    # ---- finalize: add bias, write lane-dense output tile --------------------
    @pl.when(k == n_k - 1)
    def _():
        o_ref[...] = (acc_ref[...]
                      + bias_ref[...].astype(jnp.float32)).astype(o_ref.dtype)


def prenorm_linear_pallas(x, gamma, beta, w, bias, *, eps=1e-5,
                          tile_m=256, tile_n=256, tile_k=512):
    """Fused PreNorm with fn = Linear:  Linear(LayerNorm(x)).

    x: (..., D); gamma/beta: (D,); w: (D, Dout); bias: (Dout,).
    Returns (..., Dout) in x.dtype.
    """
    orig_shape = x.shape
    D = orig_shape[-1]
    x2d = x.reshape(-1, D)
    R = x2d.shape[0]
    Dw, Dout = w.shape
    assert Dw == D, "weight input dim must match feature dim"

    # ---- tile selection ------------------------------------------------------
    # Rows: big tiles amortize the ~0.35us per-grid-step overhead; remainder is
    # zero-padded (no divisibility asserts) and sliced off afterwards.
    tile_m = min(tile_m, _round_up(R, 8))
    Rp = _round_up(R, tile_m)
    # Output features: pad to a lane-dense multiple of 128 (unmasked stores).
    Doutp = _round_up(Dout, 128) if Dout % 128 else Dout
    tile_n = min(tile_n, Doutp)
    if Doutp % tile_n:
        tile_n = Doutp
    # Reduction dim: only tile K when slices stay 128-lane aligned; otherwise
    # keep the whole feature dim in one block (it must be resident for LN anyway).
    if D % tile_k or tile_k % 128:
        tile_k = D
    n_k = D // tile_k

    xp = x2d if Rp == R else jnp.pad(x2d, ((0, Rp - R), (0, 0)))
    wp = w if Doutp == Dout else jnp.pad(w, ((0, 0), (0, Doutp - Dout)))
    biasp = bias if Doutp == Dout else jnp.pad(bias, (0, Doutp - Dout))
    g2 = gamma.reshape(1, D)
    b2 = beta.reshape(1, D)
    bias2 = biasp.reshape(1, Doutp)

    grid = (Rp // tile_m, Doutp // tile_n, n_k)

    out = pl.pallas_call(
        functools.partial(_prenorm_linear_kernel, eps=eps, inv_d=1.0 / D,
                          tile_k=tile_k, n_k=n_k),
        out_shape=jax.ShapeDtypeStruct((Rp, Doutp), x.dtype),
        grid_spec=pltpu.PrefetchScalarGridSpec(
            num_scalar_prefetch=0,
            grid=grid,
            in_specs=[
                # full-D row tile, resident in VMEM across j/k (index = (i, 0))
                pl.BlockSpec((tile_m, D), lambda i, j, k: (i, 0)),
                # gamma / beta: K slices (grid-invariant over i, j)
                pl.BlockSpec((1, tile_k), lambda i, j, k: (0, k)),
                pl.BlockSpec((1, tile_k), lambda i, j, k: (0, k)),
                # weight tile (K, N_out), original dtype (no f32 upcast)
                pl.BlockSpec((tile_k, tile_n), lambda i, j, k: (k, j)),
                # bias: N_out slice
                pl.BlockSpec((1, tile_n), lambda i, j, k: (0, j)),
            ],
            out_specs=pl.BlockSpec((tile_m, tile_n), lambda i, j, k: (i, j)),
            scratch_shapes=[
                pltpu.VMEM((tile_m, 1), jnp.float32),       # mean
                pltpu.VMEM((tile_m, 1), jnp.float32),       # rstd
                pltpu.VMEM((tile_m, tile_n), jnp.float32),  # f32 accumulator
            ],
        ),
        compiler_params=pltpu.CompilerParams(
            # rows / out-features parallel (megacore), K reduction sequential
            dimension_semantics=("parallel", "parallel", "arbitrary"),
            # above v5e's 16 MiB default, with headroom under v7x's 64 MiB VMEM
            vmem_limit_bytes=48 * 1024 * 1024,
        ),
    )(xp, g2, b2, wp, bias2)

    out = out[:R, :Dout]
    return out.reshape(*orig_shape[:-1], Dout)


# ================ Standalone LayerNorm kernel (arbitrary fn) =================
def _layernorm_kernel(x_ref, g_ref, b_ref, o_ref, *, eps, inv_d):
    x = x_ref[...].astype(jnp.float32)
    s = jnp.sum(x, axis=-1, keepdims=True)
    sq = jnp.sum(x * x, axis=-1, keepdims=True)
    mean = s * inv_d
    var = sq * inv_d - mean * mean
    rstd = jax.lax.rsqrt(var + eps)
    y = (x - mean) * rstd * g_ref[...].astype(jnp.float32) \
        + b_ref[...].astype(jnp.float32)
    o_ref[...] = y.astype(o_ref.dtype)


def layernorm_pallas(x2d, gamma, beta, *, eps=1e-5, tile_r=256):
    """x2d: (R, D) rows; gamma/beta: (D,). LayerNorm over last axis."""
    R, D = x2d.shape
    tile_r = min(tile_r, _round_up(R, 8))
    Rp = _round_up(R, tile_r)
    xp = x2d if Rp == R else jnp.pad(x2d, ((0, Rp - R), (0, 0)))
    g2 = gamma.reshape(1, D)
    b2 = beta.reshape(1, D)
    out = pl.pallas_call(
        functools.partial(_layernorm_kernel, eps=eps, inv_d=1.0 / D),
        out_shape=jax.ShapeDtypeStruct((Rp, D), x2d.dtype),
        grid_spec=pltpu.PrefetchScalarGridSpec(
            num_scalar_prefetch=0,
            grid=(Rp // tile_r,),
            in_specs=[
                pl.BlockSpec((tile_r, D), lambda i: (i, 0)),
                pl.BlockSpec((1, D), lambda i: (0, 0)),
                pl.BlockSpec((1, D), lambda i: (0, 0)),
            ],
            out_specs=pl.BlockSpec((tile_r, D), lambda i: (i, 0)),
        ),
        compiler_params=pltpu.CompilerParams(
            dimension_semantics=("parallel",),
            vmem_limit_bytes=48 * 1024 * 1024,
        ),
    )(xp, g2, b2)
    return out[:R]


def prenorm_apply(x, gamma, beta, fn, **kwargs):
    """Generic PreNorm.forward: fn(LayerNorm(x), **kwargs).

    Prefer prenorm_linear_pallas when fn begins with a Linear (fused path, no
    HBM round trip of the normalized activations)."""
    B, N, D = x.shape
    normed = layernorm_pallas(x.reshape(B * N, D), gamma, beta)
    out2d = fn(normed, **kwargs)
    return out2d.reshape(B, N, out2d.shape[-1])


# ==================================== main ===================================
if __name__ == "__main__":
    eps = 1e-5

    def ref_prenorm_linear(x, gamma, beta, w, bias):
        mean = jnp.mean(x, axis=-1, keepdims=True)
        var = jnp.mean((x - mean) ** 2, axis=-1, keepdims=True)
        normed = (x - mean) / jnp.sqrt(var + eps) * gamma + beta
        return normed @ w + bias

    key = jax.random.PRNGKey(0)

    # ---- case 1: small ViT-ish shapes (B=2, N=8, D=32, Dout=32) -------------
    B, N, D, Dout = 2, 8, 32, 32
    kx, kg, kb, kw, kbias = jax.random.split(key, 5)
    x = jax.random.normal(kx, (B, N, D), dtype=jnp.float32)
    gamma = 1.0 + 0.1 * jax.random.normal(kg, (D,), dtype=jnp.float32)
    beta = 0.1 * jax.random.normal(kb, (D,), dtype=jnp.float32)
    w = jax.random.normal(kw, (D, Dout), dtype=jnp.float32) / jnp.sqrt(D)
    bias = 0.01 * jax.random.normal(kbias, (Dout,), dtype=jnp.float32)

    out = prenorm_linear_pallas(x, gamma, beta, w, bias, eps=eps)
    jax.block_until_ready(out)
    ref = ref_prenorm_linear(x, gamma, beta, w, bias)
    assert out.shape == ref.shape
    assert jnp.allclose(out, ref, atol=1e-4, rtol=1e-4), "fused mismatch (case 1)"

    # ---- case 2: multi row-tile, row padding, lane-dense-padded output ------
    B2, N2, D2, Dout2 = 2, 72, 128, 96          # R=144 rows -> padded to 192
    k2 = jax.random.split(jax.random.PRNGKey(1), 5)
    x2 = jax.random.normal(k2[0], (B2, N2, D2), dtype=jnp.float32)
    g2 = 1.0 + 0.1 * jax.random.normal(k2[1], (D2,), dtype=jnp.float32)
    b2 = 0.1 * jax.random.normal(k2[2], (D2,), dtype=jnp.float32)
    w2 = jax.random.normal(k2[3], (D2, Dout2), dtype=jnp.float32) / jnp.sqrt(D2)
    bias2 = 0.01 * jax.random.normal(k2[4], (Dout2,), dtype=jnp.float32)

    out2 = prenorm_linear_pallas(x2, g2, b2, w2, bias2, eps=eps, tile_m=64)
    jax.block_until_ready(out2)
    ref2 = ref_prenorm_linear(x2, g2, b2, w2, bias2)
    assert jnp.allclose(out2, ref2, atol=1e-4, rtol=1e-4), "fused mismatch (case 2)"

    # ---- case 3: K-tiled reduction path (n_k > 1) ----------------------------
    B3, N3, D3, Dout3 = 2, 16, 256, 128
    k3 = jax.random.split(jax.random.PRNGKey(2), 5)
    x3 = jax.random.normal(k3[0], (B3, N3, D3), dtype=jnp.float32)
    g3 = 1.0 + 0.1 * jax.random.normal(k3[1], (D3,), dtype=jnp.float32)
    b3 = 0.1 * jax.random.normal(k3[2], (D3,), dtype=jnp.float32)
    w3 = jax.random.normal(k3[3], (D3, Dout3), dtype=jnp.float32) / jnp.sqrt(D3)
    bias3 = 0.01 * jax.random.normal(k3[4], (Dout3,), dtype=jnp.float32)

    out3 = prenorm_linear_pallas(x3, g3, b3, w3, bias3, eps=eps, tile_k=128)
    jax.block_until_ready(out3)
    ref3 = ref_prenorm_linear(x3, g3, b3, w3, bias3)
    assert jnp.allclose(out3, ref3, atol=1e-4, rtol=1e-4), "fused mismatch (case 3)"

    # ---- generic PreNorm path (standalone LN kernel + arbitrary fn) ---------
    fn = lambda t: t @ w + bias
    out4 = prenorm_apply(x, gamma, beta, fn)
    jax.block_until_ready(out4)
    assert jnp.allclose(out4, ref, atol=1e-4, rtol=1e-4), "generic path mismatch"

    print("KERNEL_OK")
</pallas_src>

<mosaic_0001>
module attributes {stable_mosaic.version = 11 : i64} {
  func.func @_prenorm_linear_kernel(%arg0: i32, %arg1: i32, %arg2: i32, %arg3: memref<16x32xf32, #tpu.memory_space<vmem>>, %arg4: memref<1x32xf32, #tpu.memory_space<vmem>>, %arg5: memref<1x32xf32, #tpu.memory_space<vmem>>, %arg6: memref<32x128xf32, #tpu.memory_space<vmem>>, %arg7: memref<1x128xf32, #tpu.memory_space<vmem>>, %arg8: memref<16x128xf32, #tpu.memory_space<vmem>>, %arg9: memref<16x1xf32, #tpu.memory_space<vmem>>, %arg10: memref<16x1xf32, #tpu.memory_space<vmem>>, %arg11: memref<16x128xf32, #tpu.memory_space<vmem>>) attributes {dimension_semantics = [#tpu.dimension_semantics<parallel>, #tpu.dimension_semantics<parallel>, #tpu.dimension_semantics<arbitrary>], iteration_bounds = array<i64: 1, 1, 1>, scalar_prefetch = 0 : i64, scratch_operands = 3 : i64, tpu.core_type = #tpu.core_type<tc>, window_params = [{transform_indices = @transform_0, window_bounds = array<i64: 16, 32>}, {transform_indices = @transform_1, window_bounds = array<i64: 1, 32>}, {transform_indices = @transform_2, window_bounds = array<i64: 1, 32>}, {transform_indices = @transform_3, window_bounds = array<i64: 32, 128>}, {transform_indices = @transform_4, window_bounds = array<i64: 1, 128>}, {transform_indices = @transform_5, window_bounds = array<i64: 16, 128>}]} {
    %c0_i32 = arith.constant 0 : i32
    %0 = arith.cmpi eq, %arg2, %c0_i32 : i32
    %1 = arith.extui %0 : i1 to i32
    %c0_i32_0 = arith.constant 0 : i32
    %2 = arith.cmpi ne, %1, %c0_i32_0 : i32
    scf.if %2 {
      %c0_18 = arith.constant 0 : index
      %c0_19 = arith.constant 0 : index
      %24 = vector.load %arg3[%c0_18, %c0_19] : memref<16x32xf32, #tpu.memory_space<vmem>>, vector<16x32xf32>
      %cst_20 = arith.constant dense<0.000000e+00> : vector<16xf32>
      %25 = vector.multi_reduction <add>, %24, %cst_20 [1] : vector<16x32xf32> to vector<16xf32>
      %26 = vector.shape_cast %25 : vector<16xf32> to vector<16x1xf32>
      %27 = arith.mulf %24, %24 : vector<16x32xf32>
      %cst_21 = arith.constant dense<0.000000e+00> : vector<16xf32>
      %28 = vector.multi_reduction <add>, %27, %cst_21 [1] : vector<16x32xf32> to vector<16xf32>
      %29 = vector.shape_cast %28 : vector<16xf32> to vector<16x1xf32>
      %cst_22 = arith.constant 3.125000e-02 : f32
      %30 = vector.broadcast %cst_22 : f32 to vector<16x1xf32>
      %31 = arith.mulf %26, %30 : vector<16x1xf32>
      %cst_23 = arith.constant 3.125000e-02 : f32
      %32 = vector.broadcast %cst_23 : f32 to vector<16x1xf32>
      %33 = arith.mulf %29, %32 : vector<16x1xf32>
      %34 = arith.mulf %31, %31 : vector<16x1xf32>
      %35 = arith.subf %33, %34 : vector<16x1xf32>
      %c0_24 = arith.constant 0 : index
      %c0_25 = arith.constant 0 : index
      %36 = vector.load %arg9[%c0_24, %c0_25] : memref<16x1xf32, #tpu.memory_space<vmem>>, vector<16x1xf32>
      tpu.vector_store %arg9[%c0_24, %c0_25], %31 {strides = array<i32>} : memref<16x1xf32, #tpu.memory_space<vmem>>, vector<16x1xf32>,
      %cst_26 = arith.constant 9.99999974E-6 : f32
      %37 = vector.broadcast %cst_26 : f32 to vector<16x1xf32>
      %38 = arith.addf %35, %37 : vector<16x1xf32>
      %39 = math.rsqrt %38 : vector<16x1xf32>
      %c0_27 = arith.constant 0 : index
      %c0_28 = arith.constant 0 : index
      %40 = vector.load %arg10[%c0_27, %c0_28] : memref<16x1xf32, #tpu.memory_space<vmem>>, vector<16x1xf32>
      tpu.vector_store %arg10[%c0_27, %c0_28], %39 {strides = array<i32>} : memref<16x1xf32, #tpu.memory_space<vmem>>, vector<16x1xf32>,
      %cst_29 = arith.constant 0.000000e+00 : f32
      %41 = vector.broadcast %cst_29 : f32 to vector<16x128xf32>
      %c0_30 = arith.constant 0 : index
      %c0_31 = arith.constant 0 : index
      %42 = vector.load %arg11[%c0_30, %c0_31] : memref<16x128xf32, #tpu.memory_space<vmem>>, vector<16x128xf32>
      tpu.vector_store %arg11[%c0_30, %c0_31], %41 {strides = array<i32>} : memref<16x128xf32, #tpu.memory_space<vmem>>, vector<16x128xf32>,
    } else {
    }
    %c0 = arith.constant 0 : index
    %c0_1 = arith.constant 0 : index
    %3 = vector.load %arg3[%c0, %c0_1] : memref<16x32xf32, #tpu.memory_space<vmem>>, vector<16x32xf32>
    %c0_2 = arith.constant 0 : index
    %c0_3 = arith.constant 0 : index
    %4 = vector.load %arg9[%c0_2, %c0_3] : memref<16x1xf32, #tpu.memory_space<vmem>>, vector<16x1xf32>
    %5 = vector.broadcast %4 : vector<16x1xf32> to vector<16x32xf32>
    %6 = arith.subf %3, %5 : vector<16x32xf32>
    %c0_4 = arith.constant 0 : index
    %c0_5 = arith.constant 0 : index
    %7 = vector.load %arg10[%c0_4, %c0_5] : memref<16x1xf32, #tpu.memory_space<vmem>>, vector<16x1xf32>
    %8 = vector.broadcast %7 : vector<16x1xf32> to vector<16x32xf32>
    %9 = arith.mulf %6, %8 : vector<16x32xf32>
    %c0_6 = arith.constant 0 : index
    %c0_7 = arith.constant 0 : index
    %10 = vector.load %arg4[%c0_6, %c0_7] : memref<1x32xf32, #tpu.memory_space<vmem>>, vector<1x32xf32>
    %11 = vector.broadcast %10 : vector<1x32xf32> to vector<16x32xf32>
    %12 = arith.mulf %9, %11 : vector<16x32xf32>
    %c0_8 = arith.constant 0 : index
    %c0_9 = arith.constant 0 : index
    %13 = vector.load %arg5[%c0_8, %c0_9] : memref<1x32xf32, #tpu.memory_space<vmem>>, vector<1x32xf32>
    %14 = vector.broadcast %13 : vector<1x32xf32> to vector<16x32xf32>
    %15 = arith.addf %12, %14 : vector<16x32xf32>
    %c0_10 = arith.constant 0 : index
    %c0_11 = arith.constant 0 : index
    %16 = vector.load %arg11[%c0_10, %c0_11] : memref<16x128xf32, #tpu.memory_space<vmem>>, vector<16x128xf32>
    %c0_12 = arith.constant 0 : index
    %c0_13 = arith.constant 0 : index
    %17 = vector.load %arg6[%c0_12, %c0_13] : memref<32x128xf32, #tpu.memory_space<vmem>>, vector<32x128xf32>
    %cst = arith.constant dense<0.000000e+00> : vector<16x128xf32>
    %18 = tpu.matmul %15, %17, %cst {dimension_numbers = #tpu.dot_dimension_numbers<[1], [0], [0], [1], [0, 0, 1, 1], [], []>} : vector<16x32xf32>, vector<32x128xf32>, vector<16x128xf32> -> vector<16x128xf32>
    %19 = arith.addf %16, %18 : vector<16x128xf32>
    %c0_14 = arith.constant 0 : index
    %c0_15 = arith.constant 0 : index
    %20 = vector.load %arg11[%c0_14, %c0_15] : memref<16x128xf32, #tpu.memory_space<vmem>>, vector<16x128xf32>
    tpu.vector_store %arg11[%c0_14, %c0_15], %19 {strides = array<i32>} : memref<16x128xf32, #tpu.memory_space<vmem>>, vector<16x128xf32>,
    %c0_i32_16 = arith.constant 0 : i32
    %21 = arith.cmpi eq, %arg2, %c0_i32_16 : i32
    %22 = arith.extui %21 : i1 to i32
    %c0_i32_17 = arith.constant 0 : i32
    %23 = arith.cmpi ne, %22, %c0_i32_17 : i32
    scf.if %23 {
      %c0_18 = arith.constant 0 : index
      %c0_19 = arith.constant 0 : index
      %24 = vector.load %arg11[%c0_18, %c0_19] : memref<16x128xf32, #tpu.memory_space<vmem>>, vector<16x128xf32>
      %c0_20 = arith.constant 0 : index
      %c0_21 = arith.constant 0 : index
      %25 = vector.load %arg7[%c0_20, %c0_21] : memref<1x128xf32, #tpu.memory_space<vmem>>, vector<1x128xf32>
      %26 = vector.broadcast %25 : vector<1x128xf32> to vector<16x128xf32>
      %27 = arith.addf %24, %26 : vector<16x128xf32>
      %c0_22 = arith.constant 0 : index
      %c0_23 = arith.constant 0 : index
      %28 = vector.load %arg8[%c0_22, %c0_23] : memref<16x128xf32, #tpu.memory_space<vmem>>, vector<16x128xf32>
      tpu.vector_store %arg8[%c0_22, %c0_23], %27 {strides = array<i32>} : memref<16x128xf32, #tpu.memory_space<vmem>>, vector<16x128xf32>,
    } else {
    }
    return
  }
  func.func @transform_0(%arg0: i32, %arg1: i32, %arg2: i32) -> (i32, i32) {
    %c0_i32 = arith.constant 0 : i32
    %c0_i32_0 = arith.constant 0 : i32
    return %arg0, %c0_i32 : i32, i32
  }
  func.func @transform_1(%arg0: i32, %arg1: i32, %arg2: i32) -> (i32, i32) {
    %c0_i32 = arith.constant 0 : i32
    %c0_i32_0 = arith.constant 0 : i32
    return %c0_i32, %arg2 : i32, i32
  }
  func.func @transform_2(%arg0: i32, %arg1: i32, %arg2: i32) -> (i32, i32) {
    %c0_i32 = arith.constant 0 : i32
    %c0_i32_0 = arith.constant 0 : i32
    return %c0_i32, %arg2 : i32, i32
  }
  func.func @transform_3(%arg0: i32, %arg1: i32, %arg2: i32) -> (i32, i32) {
    %c0_i32 = arith.constant 0 : i32
    return %arg2, %arg1 : i32, i32
  }
  func.func @transform_4(%arg0: i32, %arg1: i32, %arg2: i32) -> (i32, i32) {
    %c0_i32 = arith.constant 0 : i32
    %c0_i32_0 = arith.constant 0 : i32
    return %c0_i32, %arg1 : i32, i32
  }
  func.func @transform_5(%arg0: i32, %arg1: i32, %arg2: i32) -> (i32, i32) {
    %c0_i32 = arith.constant 0 : i32
    return %arg0, %arg1 : i32, i32
  }
}

</mosaic_0001>

<llo_original>
// kernel: tpu_custom_call.1
$region0: #{tpu_custom_call.1}
  #allocation0 [shape = 'u32[]', space=smem, size = 0x4, offset = 0x4, fixed_abs, tag = 'smem constant byte address 0x4 - core index']
  #allocation1 [shape = 'u32[144,128]{1,0:T(1,128)}', space=vmem, size = 0x12000, scoped, tag = 'internal scratch']
  #allocation2 [shape = 'f32[16,1]{1,0:T(8,128)}', space=vmem, size = 0x2000, scoped, tag = 'scratch operand']
  #allocation3 [shape = 'f32[16,1]{1,0:T(8,128)}', space=vmem, size = 0x2000, scoped, tag = 'scratch operand']
  #allocation4 [shape = 'f32[16,128]{1,0:T(8,128)}', space=vmem, size = 0x2000, scoped, tag = 'scratch operand']
  %s0 = inlined_call_operand.hbm [shape: f32[16,32], index: 0, kind: input, shape index: {}]
  %s1 = inlined_call_operand.vmem [shape: f32[1,32], index: 1, kind: input, shape index: {}]
  %s2 = inlined_call_operand.vmem [shape: f32[1,32], index: 2, kind: input, shape index: {}]
  %s3 = inlined_call_operand.hbm [shape: f32[32,128], index: 3, kind: input, shape index: {}]
  %s4 = inlined_call_operand.vmem [shape: f32[1,128], index: 4, kind: input, shape index: {}]
  %s5 = inlined_call_operand.hbm [shape: f32[16,128], index: 5, kind: output, shape index: {}]
  %s6 = sld [smem:[#allocation0]]
  $region46: #{tpu_custom_call.1} parent=0
    _
  %s8 = ssub.s32 1, %s6
  %s9 = scalar_select 0, %s8, %s6
  $region1: #{tpu_custom_call.1} parent=0
    #allocation5 [shape = 'u8[8192]{0}', space=vmem, size = 0x2000, scoped, tag = 'input window, operand 0, single buffered']
    #allocation6 [shape = 's32[1]{0}', space=sflag, size = 0x4, scoped, tag = 'scoped memory for tpu_custom_call.1']
    #allocation7 [shape = 's32[1]{0}', space=sflag, size = 0x4, scoped, tag = 'scoped memory for tpu_custom_call.1']
    #allocation8 [shape = 'u8[16384]{0}', space=vmem, size = 0x4000, scoped, tag = 'input window, operand 3, single buffered']
    #allocation9 [shape = 's32[1]{0}', space=sflag, size = 0x4, scoped, tag = 'scoped memory for tpu_custom_call.1']
    #allocation10 [shape = 'u8[8192]{0}', space=vmem, size = 0x2000, scoped, tag = 'output window, operand 0, single buffered']
    %10 = vsyncpa [#allocation6], 0
    %11 = vsyncpa [#allocation9], 0
    %12 = vsyncpa [#allocation7], 0
    // Predicated region
    $region2: #{tpu_custom_call.1} parent=1 // pred_check
      _
    $region3: #{tpu_custom_call.1} parent=1 // pred_check_branch
      %14 = sbr.rel (0) target = $region5
    $region4: #{tpu_custom_call.1} parent=1 // pred_region
      %s16 = ssub.s32 256, 256
      %17 = vsyncadd [#allocation6], %s16
      %s18 = sshll.u32 [#allocation5], 4
      %s19 = int_to_ptr.vmem [resolvable:$true] %s18
      %24 = dma.hbm_to_vmem [thread:$0]  %s0, 256, %s19, [#allocation6], 128, 128, 8
    $region5: #{tpu_custom_call.1} parent=1 // pred_fallthru
      _
    // Predicated region
    $region6: #{tpu_custom_call.1} parent=1 // pred_check
      _
    $region7: #{tpu_custom_call.1} parent=1 // pred_check_branch
      %26 = sbr.rel (0) target = $region9
    $region8: #{tpu_custom_call.1} parent=1 // pred_region
      _
    $region9: #{tpu_custom_call.1} parent=1 // pred_fallthru
      _
    // Predicated region
    $region10: #{tpu_custom_call.1} parent=1 // pred_check
      _
    $region11: #{tpu_custom_call.1} parent=1 // pred_check_branch
      %28 = sbr.rel (0) target = $region13
    $region12: #{tpu_custom_call.1} parent=1 // pred_region
      _
    $region13: #{tpu_custom_call.1} parent=1 // pred_fallthru
      _
    // Predicated region
    $region14: #{tpu_custom_call.1} parent=1 // pred_check
      _
    $region15: #{tpu_custom_call.1} parent=1 // pred_check_branch
      %30 = sbr.rel (0) target = $region17
    $region16: #{tpu_custom_call.1} parent=1 // pred_region
      %s32 = ssub.s32 512, 512
      %33 = vsyncadd [#allocation9], %s32
      %s34 = sshll.u32 [#allocation8], 4
      %s35 = int_to_ptr.vmem [resolvable:$true] %s34
      %40 = dma.hbm_to_vmem [thread:$0]  %s3, 512, %s35, [#allocation9], 128, 128, 8
    $region17: #{tpu_custom_call.1} parent=1 // pred_fallthru
      _
    // Predicated region
    $region18: #{tpu_custom_call.1} parent=1 // pred_check
      _
    $region19: #{tpu_custom_call.1} parent=1 // pred_check_branch
      %42 = sbr.rel (0) target = $region21
    $region20: #{tpu_custom_call.1} parent=1 // pred_region
      _
    $region21: #{tpu_custom_call.1} parent=1 // pred_fallthru
      _
    // Predicated region
    $region22: #{tpu_custom_call.1} parent=1 // pred_check
      _
    $region23: #{tpu_custom_call.1} parent=1 // pred_check_branch
      %44 = sbr.rel (0) target = $region25
    $region24: #{tpu_custom_call.1} parent=1 // pred_region
      %45 = dma.done [#allocation6], 256
    $region25: #{tpu_custom_call.1} parent=1 // pred_fallthru
      _
    // Predicated region
    $region26: #{tpu_custom_call.1} parent=1 // pred_check
      _
    $region27: #{tpu_custom_call.1} parent=1 // pred_check_branch
      %47 = sbr.rel (0) target = $region29
    $region28: #{tpu_custom_call.1} parent=1 // pred_region
      %48 = dma.done [#allocation9], 512
    $region29: #{tpu_custom_call.1} parent=1 // pred_fallthru
      _
    %p49 = scmp.eq.s32.totalorder 0, 0
    // Predicated region
    $region30: #{tpu_custom_call.1} parent=1 // pred_check
      %p50 = pneg %p49
    $region31: #{tpu_custom_call.1} parent=1 // pred_check_branch
      %52 = sbr.rel (%p50) target = $region33
    $region32: #{tpu_custom_call.1} parent=1 // pred_region
      %v53 = vld [vmem:[#allocation5] sm:$0xff]
      %v54 = vld [vmem:[#allocation5 + $0x8] sm:$0xff]
      %vm55 = vcmask 261120
      %v56 = vsel %vm55, %v53, 0.0
      %57 = vadd.xlane.f32.xlu0 %v56
      %v58 = vpop.xlane.xlu0 %57
      %v59 = vsel %vm55, %v54, 0.0
      %60 = vadd.xlane.f32.xlu0 %v59
      %v61 = vpop.xlane.xlu0 %60
      %v62 = vmul.f32 %v53, %v53
      %v63 = vmul.f32 %v54, %v54
      %v64 = vsel %vm55, %v62, 0.0
      %65 = vadd.xlane.f32.xlu0 %v64
      %v66 = vpop.xlane.xlu0 %65
      %v67 = vsel %vm55, %v63, 0.0
      %68 = vadd.xlane.f32.xlu0 %v67
      %v69 = vpop.xlane.xlu0 %68
      %v70 = vmul.f32 %v58, 0.03125
      %v71 = vmul.f32 %v61, 0.03125
      %v72 = vmul.f32 %v66, 0.03125
      %v73 = vmul.f32 %v69, 0.03125
      %v74 = vmul.f32 %v70, %v70
      %v75 = vmul.f32 %v71, %v71
      %v76 = vsub.f32 %v72, %v74
      %v77 = vsub.f32 %v73, %v75
      %vm78 = vcmask 7168
      %79 = vst.msk [vmem:[#allocation2] sm:$0xff] %vm78, %v70
      %80 = vst.msk [vmem:[#allocation2 + $0x8] sm:$0xff] %vm78, %v71
      %v81 = vadd.f32 %v76, 1e-05
      %v82 = vadd.f32 %v77, 1e-05
      %v83 = vrsqrt.pop %v81
      %v84 = vrsqrt.pop %v82
      %85 = vst.msk [vmem:[#allocation3] sm:$0xff] %vm78, %v83
      %86 = vst.msk [vmem:[#allocation3 + $0x8] sm:$0xff] %vm78, %v84
      %87 = vst [vmem:[#allocation4] sm:$0xff] 0.0
      %88 = vst [vmem:[#allocation4 + $0x8] sm:$0xff] 0.0
    $region33: #{tpu_custom_call.1} parent=1 // pred_fallthru
      _
    %v89 = vld [vmem:[#allocation5] sm:$0xff]
    %v90 = vld [vmem:[#allocation5 + $0x8] sm:$0xff]
    %v91 = vld [vmem:[#allocation2] sm:$0xff]
    %v92 = vld [vmem:[#allocation2 + $0x8] sm:$0xff]
    %94 = vset.pattern.permute.xlu0 0
    %95 = vperm.xlu0 %94, %v91
    %v96 = vpop.permute.xlu0 %95
    %99 = vset.pattern.permute.xlu0 0
    %100 = vperm.xlu0 %99, %v92
    %v101 = vpop.permute.xlu0 %100
    %v103 = vsub.f32 %v89, %v96
    %v104 = vsub.f32 %v90, %v101
    %v105 = vld [vmem:[#allocation3] sm:$0xff]
    %v106 = vld [vmem:[#allocation3 + $0x8] sm:$0xff]
    %108 = vset.pattern.permute.xlu0 0
    %109 = vperm.xlu0 %108, %v105
    %v110 = vpop.permute.xlu0 %109
    %113 = vset.pattern.permute.xlu0 0
    %114 = vperm.xlu0 %113, %v106
    %v115 = vpop.permute.xlu0 %114
    %v117 = vmul.f32 %v103, %v110
    %v118 = vmul.f32 %v104, %v115
    %v119 = vld [vmem:[%s1] sm:$0x1]
    %v121 = vlaneseq
    %v122 = vshrl.u32 %v121, 7
    %v123 = vsub.s32 0, %v122
    %v124 = vrot.slane %v119, %v123
    %v126 = vmul.f32 %v117, %v124
    %v127 = vmul.f32 %v118, %v124
    %v128 = vld [vmem:[%s2] sm:$0x1]
    %v130 = vlaneseq
    %v131 = vshrl.u32 %v130, 7
    %v132 = vsub.s32 0, %v131
    %v133 = vrot.slane %v128, %v132
    %v135 = vadd.f32 %v126, %v133
    %v136 = vadd.f32 %v127, %v133
    %v137 = vld [vmem:[#allocation4] sm:$0xff]
    %v138 = vld [vmem:[#allocation4 + $0x8] sm:$0xff]
    %v139 = vld [vmem:[#allocation8] sm:$0xff]
    %v140 = vld [vmem:[#allocation8 + $0x8] sm:$0xff]
    %v141 = vld [vmem:[#allocation8 + $0x10] sm:$0xff]
    %v142 = vld [vmem:[#allocation8 + $0x18] sm:$0xff]
    %vm143 = vcmask 261120
    %v145 = vsel %vm143, %v135, 0
    %v148 = vsel %vm143, %v136, 0
    %150 = vmatprep.subr.mxu0 0.0
    %151 = vmatpush1.msra.mxu0 %v139
    %152 = vmatprep.subr.mxu0 0.0
    %153 = vmatpush1.msra.mxu0 %v140
    %154 = vmatprep.subr.mxu0 0.0
    %155 = vmatpush1.msra.mxu0 %v141
    %156 = vmatprep.subr.mxu0 0.0
    %157 = vmatpush1.msra.mxu0 %v142
    %158 = vmatprep.subr.mxu0 0.0
    %159 = vmatpush1.msra.mxu0 0.0
    %160 = vmatprep.subr.mxu0 0.0
    %161 = vmatpush1.msra.mxu0 0.0
    %162 = vmatprep.subr.mxu0 0.0
    %163 = vmatpush1.msra.mxu0 0.0
    %164 = vmatprep.subr.mxu0 0.0
    %165 = vmatpush1.msra.mxu0 0.0
    %166 = vmatprep.subr.mxu0 0.0
    %167 = vmatpush1.msra.mxu0 0.0
    %168 = vmatprep.subr.mxu0 0.0
    %169 = vmatpush1.msra.mxu0 0.0
    %170 = vmatprep.subr.mxu0 0.0
    %171 = vmatpush1.msra.mxu0 0.0
    %172 = vmatprep.subr.mxu0 0.0
    %173 = vmatpush1.msra.mxu0 0.0
    %174 = vmatprep.subr.mxu0 0.0
    %175 = vmatpush1.msra.mxu0 0.0
    %176 = vmatprep.subr.mxu0 0.0
    %177 = vmatpush1.msra.mxu0 0.0
    %178 = vmatprep.subr.mxu0 0.0
    %179 = vmatpush1.msra.mxu0 0.0
    %180 = vmatprep.subr.mxu0 0.0
    %181 = vmatpush1.msra.mxu0 0.0
    %182 = vmatprep.subr.mxu0 0.0
    %183 = vmatpush1.msra.mxu0 0.0
    %184 = vmatprep.subr.mxu0 0.0
    %185 = vmatpush1.msra.mxu0 0.0
    %186 = vmatprep.subr.mxu0 0.0
    %187 = vmatpush1.msra.mxu0 0.0
    %188 = vmatprep.subr.mxu0 0.0
    %189 = vmatpush1.msra.mxu0 0.0
    %190 = vmatprep.subr.mxu0 0.0
    %191 = vmatpush1.msra.mxu0 0.0
    %192 = vmatprep.subr.mxu0 0.0
    %193 = vmatpush1.msra.mxu0 0.0
    %194 = vmatprep.subr.mxu0 0.0
    %195 = vmatpush1.msra.mxu0 0.0
    %196 = vmatprep.subr.mxu0 0.0
    %197 = vmatpush1.msra.mxu0 0.0
    %198 = vmatprep.subr.mxu0 0.0
    %199 = vmatpush1.msra.mxu0 0.0
    %200 = vmatprep.subr.mxu0 0.0
    %201 = vmatpush1.msra.mxu0 0.0
    %202 = vmatprep.subr.mxu0 0.0
    %203 = vmatpush1.msra.mxu0 0.0
    %204 = vmatprep.subr.mxu0 0.0
    %205 = vmatpush1.msra.mxu0 0.0
    %206 = vmatprep.subr.mxu0 0.0
    %207 = vmatpush1.msra.mxu0 0.0
    %208 = vmatprep.subr.mxu0 0.0
    %209 = vmatpush1.msra.mxu0 0.0
    %210 = vmatprep.subr.mxu0 0.0
    %211 = vmatpush1.msra.mxu0 0.0
    %212 = vmatprep.subr.mxu0 0.0
    %213 = vmatpush1.msra.mxu0 0.0
    %214 = vmatprep.mubr.f32.mxu0 0.0
    %215 = vmatmul.mubr.f32.gmra.mrb[0].mxu0 %v145
    %v216 = vpop.f32.mrb[0].mxu0
    %v217 = vadd.f32 0.0, %v216
    %v218 = vpop.f32.mrb[0].mxu0
    %219 = vmatprep.mubr.f32.mxu0 0.0
    %220 = vmatmul.mubr.f32.gmra.mrb[0].mxu0 %v148
    %v221 = vpop.f32.mrb[0].mxu0
    %v222 = vadd.f32 0.0, %v221
    %v223 = vpop.f32.mrb[0].mxu0
    %224 = vdwg.mxu0
    %v225 = vadd.f32 %v137, %v217
    %v226 = vadd.f32 %v138, %v222
    %227 = vst [vmem:[#allocation4] sm:$0xff] %v225
    %228 = vst [vmem:[#allocation4 + $0x8] sm:$0xff] %v226
    // Predicated region
    $region34: #{tpu_custom_call.1} parent=1 // pred_check
      %p229 = pneg %p49
    $region35: #{tpu_custom_call.1} parent=1 // pred_check_branch
      %231 = sbr.rel (%p229) target = $region37
    $region36: #{tpu_custom_call.1} parent=1 // pred_region
      %v232 = vld [vmem:[#allocation4] sm:$0xff]
      %v233 = vld [vmem:[#allocation4 + $0x8] sm:$0xff]
      %v234 = vld [vmem:[%s4] sm:$0x1]
      %v236 = vlaneseq
      %v237 = vshrl.u32 %v236, 7
      %v238 = vsub.s32 0, %v237
      %v239 = vrot.slane %v234, %v238
      %v241 = vadd.f32 %v232, %v239
      %v242 = vadd.f32 %v233, %v239
      %243 = vst [vmem:[#allocation10] sm:$0xff] %v241
      %244 = vst [vmem:[#allocation10 + $0x8] sm:$0xff] %v242
    $region37: #{tpu_custom_call.1} parent=1 // pred_fallthru
      _
    // Predicated region
    $region38: #{tpu_custom_call.1} parent=1 // pred_check
      _
    $region39: #{tpu_custom_call.1} parent=1 // pred_check_branch
      %246 = sbr.rel (0) target = $region41
    $region40: #{tpu_custom_call.1} parent=1 // pred_region
      %s248 = ssub.s32 256, 256
      %249 = vsyncadd [#allocation7], %s248
      %s250 = sshll.u32 [#allocation10], 4
      %s251 = int_to_ptr.vmem [resolvable:$true] %s250
      %256 = dma.vmem_to_hbm [thread:$0]  %s251, 256, %s5, [#allocation7], 128, 128, 8
    $region41: #{tpu_custom_call.1} parent=1 // pred_fallthru
      _
    // Predicated region
    $region42: #{tpu_custom_call.1} parent=1 // pred_check
      _
    $region43: #{tpu_custom_call.1} parent=1 // pred_check_branch
      %258 = sbr.rel (0) target = $region45
    $region44: #{tpu_custom_call.1} parent=1 // pred_region
      %259 = dma.done [#allocation7], 256
    $region45: #{tpu_custom_call.1} parent=1 // pred_fallthru
      _
    %260 = vsyncpa [#allocation6], 1
    %261 = vsyncpa [#allocation9], 1
    %262 = vsyncpa [#allocation7], 1

</llo_original>
